<compile_context>
chip_gen: v6e
topology: v6e:2x2x1
jax: 0.10.0
libtpu: 0.0.40
codegen_flags: <defaults>
</compile_context>

<pallas_src>
import jax
import jax.numpy as jnp
from jax.experimental import pallas as pl
from jax.experimental.pallas import tpu as pltpu


def _residual_pointwise_kernel(w_sref, b_sref, x_ref, o_ref):
    # w_sref: (C*C,) f32 in SMEM (row-major conv weight W[o, c])
    # b_sref: (C,)   f32 in SMEM
    # x_ref / o_ref: (C, T) VMEM tiles; T (spatial) is the 128-lane axis.
    C, _ = x_ref.shape
    x = x_ref[...]                                   # (C, T), loaded once
    rows = []
    for o in range(C):                               # unrolled at trace time
        # Residual folded into the diagonal coefficient: (1 + W[o,o]) * x[o].
        acc = (1.0 + w_sref[o * C + o]) * x[o:o + 1, :] + b_sref[o]
        for c in range(C):
            if c == o:
                continue
            acc = acc + w_sref[o * C + c] * x[c:c + 1, :]   # VPU scalar FMA
        rows.append(acc)
    # Single lane-dense store of the full (C, T) tile.
    o_ref[...] = jnp.concatenate(rows, axis=0) if C > 1 else rows[0]


def _pick_tile_hw(hw, max_tile=8192):
    """Largest spatial tile: multiple of 128 dividing hw, capped at max_tile.
    Falls back to the full extent when hw is not a multiple of 128."""
    if hw % 128 != 0:
        return hw                     # full-extent block is always legal
    t = min(hw, max_tile)
    t -= t % 128
    while hw % t != 0:
        t -= 128
    return t


def residual_pointwise(x_nchw, w_conv, b_conv, *, max_tile_hw=8192):
    """Computes Conv2d_1x1(x) + x  (== Residual(fn)(x) with fn = 1x1 conv).

    x_nchw: (N, C, H, W) float32
    w_conv: (C, C)  1x1 conv weight (PyTorch layout: W[out, in])
    b_conv: (C,)
    """
    N, C, H, W = x_nchw.shape
    HW = H * W
    # Free reshape of the trailing contiguous dims; NO transpose.
    x3 = x_nchw.reshape(N, C, HW)

    tile_hw = _pick_tile_hw(HW, max_tile_hw)
    grid = (N, HW // tile_hw)

    # VMEM budget: in + out tiles, double-buffered, plus slack; clamp so it
    # also fits v7x (64 MiB physical / 32 MiB scoped default).
    block_bytes = C * tile_hw * x3.dtype.itemsize
    vmem_budget = min(max(4 * block_bytes + (2 << 20), 8 << 20), 32 << 20)

    out3 = pl.pallas_call(
        _residual_pointwise_kernel,
        out_shape=jax.ShapeDtypeStruct((N, C, HW), x3.dtype),
        grid_spec=pltpu.PrefetchScalarGridSpec(
            num_scalar_prefetch=2,            # w_flat, b -> SMEM scalars
            grid=grid,
            in_specs=[
                pl.BlockSpec((None, C, tile_hw),
                             lambda n, j, w_s, b_s: (n, 0, j)),
            ],
            out_specs=pl.BlockSpec((None, C, tile_hw),
                                   lambda n, j, w_s, b_s: (n, 0, j)),
        ),
        compiler_params=pltpu.CompilerParams(
            dimension_semantics=("parallel", "parallel"),
            vmem_limit_bytes=vmem_budget,
        ),
    )(w_conv.reshape(C * C), b_conv, x3)

    # Free reshape back to NCHW; still no transpose.
    return out3.reshape(N, C, H, W)


if __name__ == "__main__":
    key = jax.random.PRNGKey(0)
    kx, kw, kb = jax.random.split(key, 3)

    N, C, H, W = 2, 4, 16, 16
    x = jax.random.normal(kx, (N, C, H, W), dtype=jnp.float32)

    # Deterministic parameter init for fn = Conv2d(C, C, kernel_size=1)
    fan_in = C  # 1x1 kernel
    bound = 1.0 / (fan_in ** 0.5)
    w_conv = jax.random.uniform(kw, (C, C), minval=-bound, maxval=bound,
                                dtype=jnp.float32)
    b_conv = jax.random.uniform(kb, (C,), minval=-bound, maxval=bound,
                                dtype=jnp.float32)

    out = residual_pointwise(x, w_conv, b_conv)
    out = jax.block_until_ready(out)

    # Reference: fn(x) + x with fn = 1x1 conv, computed in plain JAX.
    ref = jnp.einsum("nchw,oc->nohw", x, w_conv) + b_conv[None, :, None, None] + x
    assert out.shape == (N, C, H, W)
    assert jnp.allclose(out, ref, atol=1e-5, rtol=1e-5)

    print("KERNEL_OK")
</pallas_src>

<mosaic_0001>
module attributes {stable_mosaic.version = 11 : i64} {
  func.func @_residual_pointwise_kernel(%arg0: i32, %arg1: i32, %arg2: memref<16xf32, #tpu.memory_space<smem>>, %arg3: memref<4xf32, #tpu.memory_space<smem>>, %arg4: memref<1x4x256xf32, #tpu.memory_space<vmem>>, %arg5: memref<1x4x256xf32, #tpu.memory_space<vmem>>) attributes {dimension_semantics = [#tpu.dimension_semantics<parallel>, #tpu.dimension_semantics<parallel>], iteration_bounds = array<i64: 2, 1>, scalar_prefetch = 2 : i64, scratch_operands = 0 : i64, tpu.core_type = #tpu.core_type<tc>, window_params = [{transform_indices = @transform_0, window_bounds = array<i64: 1, 4, 256>}, {transform_indices = @transform_1, window_bounds = array<i64: 1, 4, 256>}]} {
    %c0 = arith.constant 0 : index
    %c0_0 = arith.constant 0 : index
    %c0_1 = arith.constant 0 : index
    %0 = vector.load %arg4[%c0, %c0_0, %c0_1] : memref<1x4x256xf32, #tpu.memory_space<vmem>>, vector<1x4x256xf32>
    %1 = vector.shape_cast %0 : vector<1x4x256xf32> to vector<4x256xf32>
    %c0_2 = arith.constant 0 : index
    %2 = memref.load %arg2[%c0_2] : memref<16xf32, #tpu.memory_space<smem>>
    %cst = arith.constant 1.000000e+00 : f32
    %3 = arith.addf %cst, %2 : f32
    %4 = vector.extract_strided_slice %1 {offsets = [0, 0], sizes = [1, 256], strides = [1, 1]} : vector<4x256xf32> to vector<1x256xf32>
    %5 = vector.broadcast %3 : f32 to vector<1x256xf32>
    %6 = arith.mulf %5, %4 : vector<1x256xf32>
    %c0_3 = arith.constant 0 : index
    %7 = memref.load %arg3[%c0_3] : memref<4xf32, #tpu.memory_space<smem>>
    %8 = vector.broadcast %7 : f32 to vector<1x256xf32>
    %9 = arith.addf %6, %8 : vector<1x256xf32>
    %c1 = arith.constant 1 : index
    %10 = memref.load %arg2[%c1] : memref<16xf32, #tpu.memory_space<smem>>
    %11 = vector.extract_strided_slice %1 {offsets = [1, 0], sizes = [1, 256], strides = [1, 1]} : vector<4x256xf32> to vector<1x256xf32>
    %12 = vector.broadcast %10 : f32 to vector<1x256xf32>
    %13 = arith.mulf %12, %11 : vector<1x256xf32>
    %14 = arith.addf %9, %13 : vector<1x256xf32>
    %c2 = arith.constant 2 : index
    %15 = memref.load %arg2[%c2] : memref<16xf32, #tpu.memory_space<smem>>
    %16 = vector.extract_strided_slice %1 {offsets = [2, 0], sizes = [1, 256], strides = [1, 1]} : vector<4x256xf32> to vector<1x256xf32>
    %17 = vector.broadcast %15 : f32 to vector<1x256xf32>
    %18 = arith.mulf %17, %16 : vector<1x256xf32>
    %19 = arith.addf %14, %18 : vector<1x256xf32>
    %c3 = arith.constant 3 : index
    %20 = memref.load %arg2[%c3] : memref<16xf32, #tpu.memory_space<smem>>
    %21 = vector.extract_strided_slice %1 {offsets = [3, 0], sizes = [1, 256], strides = [1, 1]} : vector<4x256xf32> to vector<1x256xf32>
    %22 = vector.broadcast %20 : f32 to vector<1x256xf32>
    %23 = arith.mulf %22, %21 : vector<1x256xf32>
    %24 = arith.addf %19, %23 : vector<1x256xf32>
    %c5 = arith.constant 5 : index
    %25 = memref.load %arg2[%c5] : memref<16xf32, #tpu.memory_space<smem>>
    %cst_4 = arith.constant 1.000000e+00 : f32
    %26 = arith.addf %cst_4, %25 : f32
    %27 = vector.extract_strided_slice %1 {offsets = [1, 0], sizes = [1, 256], strides = [1, 1]} : vector<4x256xf32> to vector<1x256xf32>
    %28 = vector.broadcast %26 : f32 to vector<1x256xf32>
    %29 = arith.mulf %28, %27 : vector<1x256xf32>
    %c1_5 = arith.constant 1 : index
    %30 = memref.load %arg3[%c1_5] : memref<4xf32, #tpu.memory_space<smem>>
    %31 = vector.broadcast %30 : f32 to vector<1x256xf32>
    %32 = arith.addf %29, %31 : vector<1x256xf32>
    %c4 = arith.constant 4 : index
    %33 = memref.load %arg2[%c4] : memref<16xf32, #tpu.memory_space<smem>>
    %34 = vector.extract_strided_slice %1 {offsets = [0, 0], sizes = [1, 256], strides = [1, 1]} : vector<4x256xf32> to vector<1x256xf32>
    %35 = vector.broadcast %33 : f32 to vector<1x256xf32>
    %36 = arith.mulf %35, %34 : vector<1x256xf32>
    %37 = arith.addf %32, %36 : vector<1x256xf32>
    %c6 = arith.constant 6 : index
    %38 = memref.load %arg2[%c6] : memref<16xf32, #tpu.memory_space<smem>>
    %39 = vector.extract_strided_slice %1 {offsets = [2, 0], sizes = [1, 256], strides = [1, 1]} : vector<4x256xf32> to vector<1x256xf32>
    %40 = vector.broadcast %38 : f32 to vector<1x256xf32>
    %41 = arith.mulf %40, %39 : vector<1x256xf32>
    %42 = arith.addf %37, %41 : vector<1x256xf32>
    %c7 = arith.constant 7 : index
    %43 = memref.load %arg2[%c7] : memref<16xf32, #tpu.memory_space<smem>>
    %44 = vector.extract_strided_slice %1 {offsets = [3, 0], sizes = [1, 256], strides = [1, 1]} : vector<4x256xf32> to vector<1x256xf32>
    %45 = vector.broadcast %43 : f32 to vector<1x256xf32>
    %46 = arith.mulf %45, %44 : vector<1x256xf32>
    %47 = arith.addf %42, %46 : vector<1x256xf32>
    %c10 = arith.constant 10 : index
    %48 = memref.load %arg2[%c10] : memref<16xf32, #tpu.memory_space<smem>>
    %cst_6 = arith.constant 1.000000e+00 : f32
    %49 = arith.addf %cst_6, %48 : f32
    %50 = vector.extract_strided_slice %1 {offsets = [2, 0], sizes = [1, 256], strides = [1, 1]} : vector<4x256xf32> to vector<1x256xf32>
    %51 = vector.broadcast %49 : f32 to vector<1x256xf32>
    %52 = arith.mulf %51, %50 : vector<1x256xf32>
    %c2_7 = arith.constant 2 : index
    %53 = memref.load %arg3[%c2_7] : memref<4xf32, #tpu.memory_space<smem>>
    %54 = vector.broadcast %53 : f32 to vector<1x256xf32>
    %55 = arith.addf %52, %54 : vector<1x256xf32>
    %c8 = arith.constant 8 : index
    %56 = memref.load %arg2[%c8] : memref<16xf32, #tpu.memory_space<smem>>
    %57 = vector.extract_strided_slice %1 {offsets = [0, 0], sizes = [1, 256], strides = [1, 1]} : vector<4x256xf32> to vector<1x256xf32>
    %58 = vector.broadcast %56 : f32 to vector<1x256xf32>
    %59 = arith.mulf %58, %57 : vector<1x256xf32>
    %60 = arith.addf %55, %59 : vector<1x256xf32>
    %c9 = arith.constant 9 : index
    %61 = memref.load %arg2[%c9] : memref<16xf32, #tpu.memory_space<smem>>
    %62 = vector.extract_strided_slice %1 {offsets = [1, 0], sizes = [1, 256], strides = [1, 1]} : vector<4x256xf32> to vector<1x256xf32>
    %63 = vector.broadcast %61 : f32 to vector<1x256xf32>
    %64 = arith.mulf %63, %62 : vector<1x256xf32>
    %65 = arith.addf %60, %64 : vector<1x256xf32>
    %c11 = arith.constant 11 : index
    %66 = memref.load %arg2[%c11] : memref<16xf32, #tpu.memory_space<smem>>
    %67 = vector.extract_strided_slice %1 {offsets = [3, 0], sizes = [1, 256], strides = [1, 1]} : vector<4x256xf32> to vector<1x256xf32>
    %68 = vector.broadcast %66 : f32 to vector<1x256xf32>
    %69 = arith.mulf %68, %67 : vector<1x256xf32>
    %70 = arith.addf %65, %69 : vector<1x256xf32>
    %c15 = arith.constant 15 : index
    %71 = memref.load %arg2[%c15] : memref<16xf32, #tpu.memory_space<smem>>
    %cst_8 = arith.constant 1.000000e+00 : f32
    %72 = arith.addf %cst_8, %71 : f32
    %73 = vector.extract_strided_slice %1 {offsets = [3, 0], sizes = [1, 256], strides = [1, 1]} : vector<4x256xf32> to vector<1x256xf32>
    %74 = vector.broadcast %72 : f32 to vector<1x256xf32>
    %75 = arith.mulf %74, %73 : vector<1x256xf32>
    %c3_9 = arith.constant 3 : index
    %76 = memref.load %arg3[%c3_9] : memref<4xf32, #tpu.memory_space<smem>>
    %77 = vector.broadcast %76 : f32 to vector<1x256xf32>
    %78 = arith.addf %75, %77 : vector<1x256xf32>
    %c12 = arith.constant 12 : index
    %79 = memref.load %arg2[%c12] : memref<16xf32, #tpu.memory_space<smem>>
    %80 = vector.extract_strided_slice %1 {offsets = [0, 0], sizes = [1, 256], strides = [1, 1]} : vector<4x256xf32> to vector<1x256xf32>
    %81 = vector.broadcast %79 : f32 to vector<1x256xf32>
    %82 = arith.mulf %81, %80 : vector<1x256xf32>
    %83 = arith.addf %78, %82 : vector<1x256xf32>
    %c13 = arith.constant 13 : index
    %84 = memref.load %arg2[%c13] : memref<16xf32, #tpu.memory_space<smem>>
    %85 = vector.extract_strided_slice %1 {offsets = [1, 0], sizes = [1, 256], strides = [1, 1]} : vector<4x256xf32> to vector<1x256xf32>
    %86 = vector.broadcast %84 : f32 to vector<1x256xf32>
    %87 = arith.mulf %86, %85 : vector<1x256xf32>
    %88 = arith.addf %83, %87 : vector<1x256xf32>
    %c14 = arith.constant 14 : index
    %89 = memref.load %arg2[%c14] : memref<16xf32, #tpu.memory_space<smem>>
    %90 = vector.extract_strided_slice %1 {offsets = [2, 0], sizes = [1, 256], strides = [1, 1]} : vector<4x256xf32> to vector<1x256xf32>
    %91 = vector.broadcast %89 : f32 to vector<1x256xf32>
    %92 = arith.mulf %91, %90 : vector<1x256xf32>
    %93 = arith.addf %88, %92 : vector<1x256xf32>
    %94 = tpu.concatenate %24, %47, %70, %93 in 0 : vector<1x256xf32>, vector<1x256xf32>, vector<1x256xf32>, vector<1x256xf32> -> vector<4x256xf32>
    %c0_10 = arith.constant 0 : index
    %c0_11 = arith.constant 0 : index
    %c0_12 = arith.constant 0 : index
    %95 = vector.load %arg5[%c0_10, %c0_11, %c0_12] : memref<1x4x256xf32, #tpu.memory_space<vmem>>, vector<1x4x256xf32>
    %96 = vector.shape_cast %95 : vector<1x4x256xf32> to vector<4x256xf32>
    %97 = vector.shape_cast %94 : vector<4x256xf32> to vector<1x4x256xf32>
    tpu.vector_store %arg5[%c0_10, %c0_11, %c0_12], %97 {strides = array<i32>} : memref<1x4x256xf32, #tpu.memory_space<vmem>>, vector<1x4x256xf32>,
    return
  }
  func.func @transform_0(%arg0: i32, %arg1: i32, %arg2: memref<16xf32, #tpu.memory_space<smem>>, %arg3: memref<4xf32, #tpu.memory_space<smem>>) -> (i32, i32, i32) {
    %c0_i32 = arith.constant 0 : i32
    %c0_i32_0 = arith.constant 0 : i32
    return %arg0, %c0_i32, %arg1 : i32, i32, i32
  }
  func.func @transform_1(%arg0: i32, %arg1: i32, %arg2: memref<16xf32, #tpu.memory_space<smem>>, %arg3: memref<4xf32, #tpu.memory_space<smem>>) -> (i32, i32, i32) {
    %c0_i32 = arith.constant 0 : i32
    %c0_i32_0 = arith.constant 0 : i32
    return %arg0, %c0_i32, %arg1 : i32, i32, i32
  }
}

</mosaic_0001>

<llo_original>
// kernel: tpu_custom_call.1
$region0: #{tpu_custom_call.1}
  #allocation0 [shape = 'u32[]', space=smem, size = 0x4, offset = 0x4, fixed_abs, tag = 'smem constant byte address 0x4 - core index']
  #allocation1 [shape = 'u32[144,128]{1,0:T(1,128)}', space=vmem, size = 0x12000, scoped, tag = 'internal scratch']
  #allocation2 [shape = 's32[1]{0}', space=sflag, size = 0x4, scoped, tag = 'scoped memory for tpu_custom_call.1']
  #allocation3 [shape = 'u8[512]{0}', space=smem, size = 0x200, scoped, tag = 'prefetched SMEM operand 0']
  #allocation4 [shape = 'u8[512]{0}', space=smem, size = 0x200, scoped, tag = 'prefetched SMEM operand 1']
  %s0 = inlined_call_operand.hbm [shape: f32[16], index: 0, kind: input, shape index: {}]
  %s1 = inlined_call_operand.vmem [shape: f32[4], index: 1, kind: input, shape index: {}]
  %s2 = inlined_call_operand.hbm [shape: f32[2,4,256], index: 2, kind: input, shape index: {}]
  %s3 = inlined_call_operand.hbm [shape: f32[2,4,256], index: 3, kind: output, shape index: {}]
  %s4 = sld [smem:[#allocation0]]
  $region41: #{tpu_custom_call.1} parent=0
    _
  %s6 = ssub.s32 1, %s4
  %s7 = scalar_select 0, %s6, %s4
  %9 = dma.hbm_to_smem %s0, 16, [#allocation3], [#allocation2]
  %s10 = sshll.u32 %s1, 4
  %s11 = int_to_ptr.vmem [resolvable:$true] %s10
  %13 = dma.vmem_to_smem %s11, 16, [#allocation4], [#allocation2]
  %14 = dma.done [#allocation2], 32
  %15 = sfence
  $region1: #{tpu_custom_call.1} parent=0
    #allocation5 [shape = 'u8[8192]{0}', space=vmem, size = 0x2000, scoped, tag = 'input window, operand 2']
    #allocation6 [shape = 's32[2]{0}', space=sflag, size = 0x8, scoped, tag = 'scoped memory for tpu_custom_call.1']
    #allocation7 [shape = 's32[2]{0}', space=sflag, size = 0x8, scoped, tag = 'scoped memory for tpu_custom_call.1']
    #allocation8 [shape = 'u8[8192]{0}', space=vmem, size = 0x2000, scoped, tag = 'output window, operand 0']
    %16 = vsyncpa [#allocation6], 0
    %s17 = scalar_lea.sflag [#allocation6], 1
    %18 = vsyncpa %s17, 0
    %19 = vsyncpa [#allocation7], 0
    %s20 = scalar_lea.sflag [#allocation7], 1
    %21 = vsyncpa %s20, 0
    loop: start=0, step=1, limit=4
    $region2: #{tpu_custom_call.1} parent=1 // loop_pre_header
      _
    $region3: #{tpu_custom_call.1} parent=1 // loop_header
      %s23 = sphi 0, %s27
      %p24 = scmp.ge.s32.totalorder %s23, 4
      %s30 = sphi 0, %s42
      %s31 = sphi 0, %s38
      %s32 = sphi 0, %s30
      %s33 = sphi 0, %s31
      %s34 = sphi 0, %s32
      %s35 = sphi 0, %s33
      %s47 = sphi 0, %s49
      %s50 = sphi 0, %s47
      %s51 = sphi 0, %s50
      %s67 = sphi 0, %s51
      %s75 = sphi 0, %s77
      %s78 = sphi 0, %s75
      %s79 = sphi 0, %s78
      %s95 = sphi 0, %s79
    $region4: #{tpu_custom_call.1} parent=1 // loop_header_branch
      %26 = sbr.rel (%p24) target = $region8
    $region5: #{tpu_custom_call.1} parent=1 // loop_body
      %s28 = ssub.s32 %s23, 1
      %s29 = ssub.s32 %s23, 2
      %s36 = sadd.s32 1, %s31
      %p37 = scmp.ge.s32.totalorder %s36, 1
      %s38 = scalar_select %p37, 0, %s36
      %s39 = sadd.s32 1, %s30
      %s40 = scalar_select %p37, %s39, %s30
      %p41 = scmp.ge.s32.totalorder %s40, 2
      %s42 = scalar_select %p41, 0, %s40
      %s43 = ssub.s32 %s30, %s42
      %s44 = ssub.s32 %s31, %s38
      %s45 = sor.u32 %s43, %s44
      %p46 = scmp.eq.s32.totalorder %s45, 0
      %s48 = sadd.s32 %s47, 1
      %s49 = scalar_select %p46, %s47, %s48
      %p52 = pneg %p46
      %p53 = scmp.eq.s32.totalorder %s23, 1
      %p54 = por %p52, %p53
      %p55 = scmp.ne.s32.totalorder %s47, %s50
      %p56 = scmp.eq.s32.totalorder %s23, 0
      %p57 = por %p55, %p56
      %p58 = scmp.ne.s32.totalorder %s47, %s50
      %p59 = scmp.eq.s32.totalorder %s28, 1
      %p60 = por %p58, %p59
      %p61 = scmp.ne.s32.totalorder %s50, %s51
      %p62 = scmp.eq.s32.totalorder %s28, 0
      %p63 = por %p61, %p62
      %p64 = scmp.ne.s32.totalorder %s50, %s51
      %p65 = scmp.eq.s32.totalorder %s29, 1
      %p66 = por %p64, %p65
      %p68 = scmp.ne.s32.totalorder %s51, %s67
      %p69 = scmp.eq.s32.totalorder %s29, 0
      %p70 = por %p68, %p69
      %s71 = ssub.s32 %s30, %s42
      %s72 = ssub.s32 %s31, %s38
      %s73 = sor.u32 %s71, %s72
      %p74 = scmp.eq.s32.totalorder %s73, 0
      %s76 = sadd.s32 %s75, 1
      %s77 = scalar_select %p74, %s75, %s76
      %p80 = pneg %p74
      %p81 = scmp.eq.s32.totalorder %s23, 1
      %p82 = por %p80, %p81
      %p83 = scmp.ne.s32.totalorder %s75, %s78
      %p84 = scmp.eq.s32.totalorder %s23, 0
      %p85 = por %p83, %p84
      %p86 = scmp.ne.s32.totalorder %s75, %s78
      %p87 = scmp.eq.s32.totalorder %s28, 1
      %p88 = por %p86, %p87
      %p89 = scmp.ne.s32.totalorder %s78, %s79
      %p90 = scmp.eq.s32.totalorder %s28, 0
      %p91 = por %p89, %p90
      %p92 = scmp.ne.s32.totalorder %s78, %s79
      %p93 = scmp.eq.s32.totalorder %s29, 1
      %p94 = por %p92, %p93
      %p96 = scmp.ne.s32.totalorder %s79, %s95
      %p97 = scmp.eq.s32.totalorder %s29, 0
      %p98 = por %p96, %p97
      %p99 = scmp.le.s32.totalorder 1, %s23
      %p100 = scmp.lt.s32.totalorder %s23, 3
      %p101 = pnand %p99, %p100
      %p102 = pneg %p101
      // Predicated region
      $region9: #{tpu_custom_call.1} parent=5 // pred_check
        _
      $region10: #{tpu_custom_call.1} parent=5 // pred_check_branch
        %104 = sbr.rel (%p101) target = $region12
      $region11: #{tpu_custom_call.1} parent=5 // pred_region
        %s105 = ssub.s32 %s23, 1
      $region12: #{tpu_custom_call.1} parent=5 // pred_fallthru
        _
      %p106 = scmp.lt.s32.totalorder %s23, 2
      // Predicated region
      $region13: #{tpu_custom_call.1} parent=5 // pred_check
        %p107 = pneg %p106
      $region14: #{tpu_custom_call.1} parent=5 // pred_check_branch
        %109 = sbr.rel (%p107) target = $region16
      $region15: #{tpu_custom_call.1} parent=5 // pred_region
        // Predicated region
        $region17: #{tpu_custom_call.1} parent=15 // pred_check
          %p110 = pneg %p57
        $region18: #{tpu_custom_call.1} parent=15 // pred_check_branch
          %112 = sbr.rel (%p110) target = $region20
        $region19: #{tpu_custom_call.1} parent=15 // pred_region
          %s113 = sand.u32 %s47, 1
          %s114 = scalar_lea.sflag [#allocation6], %s113
          %s115 = sand.u32 %s47, 1
          %s116 = smul.addr %s115, 8
          %s117 = scalar_lea.vmem [#allocation5], %s116
          %s118 = smul.u32 2, %s31
          %s120 = ssub.s32 128, 128
          %121 = vsyncadd %s114, %s120
          %s122 = smul.addr %s30, 2
          %s123 = sadd.s32 %s118, %s122
          %s124 = smul.addr %s123, 64
          %s125 = scalar_lea.hbm %s2, %s124
          %s127 = sshll.u32 %s117, 4
          %s128 = int_to_ptr.vmem [resolvable:$true] %s127
          %130 = dma.hbm_to_vmem [thread:$0]  %s125, 128, %s128, %s114
        $region20: #{tpu_custom_call.1} parent=15 // pred_fallthru
          _
      $region16: #{tpu_custom_call.1} parent=5 // pred_fallthru
        _
      %p131 = scmp.le.s32.totalorder 1, %s23
      %p132 = scmp.lt.s32.totalorder %s23, 3
      %p133 = pnand %p131, %p132
      %p134 = pneg %p133
      // Predicated region
      $region21: #{tpu_custom_call.1} parent=5 // pred_check
        _
      $region22: #{tpu_custom_call.1} parent=5 // pred_check_branch
        %136 = sbr.rel (%p133) target = $region24
      $region23: #{tpu_custom_call.1} parent=5 // pred_region
        %s137 = ssub.s32 %s23, 1
        %s138 = sand.u32 %s50, 1
        %s139 = scalar_lea.sflag [#allocation6], %s138
        %s140 = sand.u32 %s50, 1
        %s141 = smul.addr %s140, 8
        %s142 = scalar_lea.vmem [#allocation5], %s141
        // Predicated region
        $region25: #{tpu_custom_call.1} parent=23 // pred_check
          %p143 = pneg %p63
        $region26: #{tpu_custom_call.1} parent=23 // pred_check_branch
          %145 = sbr.rel (%p143) target = $region28
        $region27: #{tpu_custom_call.1} parent=23 // pred_region
          %146 = dma.done %s139, 128
        $region28: #{tpu_custom_call.1} parent=23 // pred_fallthru
          _
        %s147 = sand.u32 %s50, 1
        %s148 = scalar_lea.sflag [#allocation6], %s147
        %s149 = sand.u32 %s50, 1
        %s150 = smul.addr %s149, 8
        %s151 = scalar_lea.vmem [#allocation5], %s150
        %p152 = pneg %p63
        %p153 = pneg %p60
        %p154 = pneg %p91
        %p155 = pneg %p88
        %s156 = sand.u32 %s78, 1
        %s157 = scalar_lea.sflag [#allocation7], %s156
        %s158 = sand.u32 %s78, 1
        %s159 = smul.addr %s158, 8
        %s160 = scalar_lea.vmem [#allocation8], %s159
        %s161 = smul.u32 2, %s33
        %s162 = smul.u32 2, %s33
        %v163 = vld [vmem:[%s142] sm:$0xff]
        %s164 = sld [smem:[#allocation3]]
        %s165 = sadd.f32 %s164, 1.0
        %v166 = vstv %s165
        %v167 = vmul.f32 %v166, %v163
        %s168 = sld [smem:[#allocation4]]
        %v169 = vstv %s168
        %v170 = vadd.f32 %v167, %v169
        %s171 = sld [smem:[#allocation3 + $0x1]]
        %v172 = vstv %s171
        %v173 = vmul.f32 %v172, %v163
        %v175 = vrot.slane %v173, 5
        %v176 = vrot.slane %v175, 4
        %v178 = vadd.f32 %v170, %v176
        %s179 = sld [smem:[#allocation3 + $0x2]]
        %v180 = vstv %s179
        %v181 = vmul.f32 %v180, %v163
        %v183 = vrot.slane %v181, 6
        %v184 = vrot.slane %v183, 4
        %v186 = vadd.f32 %v178, %v184
        %s187 = sld [smem:[#allocation3 + $0x3]]
        %v188 = vstv %s187
        %v189 = vmul.f32 %v188, %v163
        %v191 = vrot.slane %v189, 7
        %v192 = vrot.slane %v191, 4
        %v194 = vadd.f32 %v186, %v192
        %s195 = sld [smem:[#allocation3 + $0x5]]
        %s196 = sadd.f32 %s195, 1.0
        %v197 = vstv %s196
        %v198 = vmul.f32 %v197, %v163
        %s199 = sld [smem:[#allocation4 + $0x1]]
        %v200 = vstv %s199
        %v201 = vadd.f32 %v198, %v200
        %s202 = sld [smem:[#allocation3 + $0x4]]
        %v203 = vstv %s202
        %v204 = vmul.f32 %v203, %v163
        %v206 = vrot.slane %v204, 7
        %v208 = vadd.f32 %v201, %v206
        %s209 = sld [smem:[#allocation3 + $0x6]]
        %v210 = vstv %s209
        %v211 = vmul.f32 %v210, %v163
        %v213 = vrot.slane %v211, 5
        %v214 = vrot.slane %v213, 4
        %v216 = vadd.f32 %v208, %v214
        %s217 = sld [smem:[#allocation3 + $0x7]]
        %v218 = vstv %s217
        %v219 = vmul.f32 %v218, %v163
        %v221 = vrot.slane %v219, 6
        %v222 = vrot.slane %v221, 4
        %v224 = vadd.f32 %v216, %v222
        %s225 = sld [smem:[#allocation3 + $0xa]]
        %s226 = sadd.f32 %s225, 1.0
        %v227 = vstv %s226
        %v228 = vmul.f32 %v227, %v163
        %s229 = sld [smem:[#allocation4 + $0x2]]
        %v230 = vstv %s229
        %v231 = vadd.f32 %v228, %v230
        %s232 = sld [smem:[#allocation3 + $0x8]]
        %v233 = vstv %s232
        %v234 = vmul.f32 %v233, %v163
        %v236 = vrot.slane %v234, 6
        %v238 = vadd.f32 %v231, %v236
        %s239 = sld [smem:[#allocation3 + $0x9]]
        %v240 = vstv %s239
        %v241 = vmul.f32 %v240, %v163
        %v243 = vrot.slane %v241, 7
        %v245 = vadd.f32 %v238, %v243
        %s246 = sld [smem:[#allocation3 + $0xb]]
        %v247 = vstv %s246
        %v248 = vmul.f32 %v247, %v163
        %v250 = vrot.slane %v248, 5
        %v251 = vrot.slane %v250, 4
        %v253 = vadd.f32 %v245, %v251
        %s254 = sld [smem:[#allocation3 + $0xf]]
        %s255 = sadd.f32 %s254, 1.0
        %v256 = vstv %s255
        %v257 = vmul.f32 %v256, %v163
        %s258 = sld [smem:[#allocation4 + $0x3]]
        %v259 = vstv %s258
        %v260 = vadd.f32 %v257, %v259
        %s261 = sld [smem:[#allocation3 + $0xc]]
        %v262 = vstv %s261
        %v263 = vmul.f32 %v262, %v163
        %v265 = vrot.slane %v263, 5
        %v267 = vadd.f32 %v260, %v265
        %s268 = sld [smem:[#allocation3 + $0xd]]
        %v269 = vstv %s268
        %v270 = vmul.f32 %v269, %v163
        %v272 = vrot.slane %v270, 6
        %v274 = vadd.f32 %v267, %v272
        %s275 = sld [smem:[#allocation3 + $0xe]]
        %v276 = vstv %s275
        %v277 = vmul.f32 %v276, %v163
        %v279 = vrot.slane %v277, 7
        %v281 = vadd.f32 %v274, %v279
        %v283 = vlaneseq
        %v284 = vshrl.u32 %v283, 7
        %v285 = vsub.s32 0, %v284
        %v286 = vrot.slane %v194, %v285
        %v287 = vlaneseq
        %v288 = vshrl.u32 %v287, 7
        %v289 = vsub.s32 4, %v288
        %v290 = vrot.slane %v194, %v289
        %v294 = vlaneseq
        %v295 = vshrl.u32 %v294, 7
        %v296 = vsub.s32 1, %v295
        %v297 = vrot.slane %v224, %v296
        %v298 = vlaneseq
        %v299 = vshrl.u32 %v298, 7
        %v300 = vsub.s32 5, %v299
        %v301 = vrot.slane %v224, %v300
        %v305 = vlaneseq
        %v306 = vshrl.u32 %v305, 7
        %v307 = vsub.s32 2, %v306
        %v308 = vrot.slane %v253, %v307
        %v309 = vlaneseq
        %v310 = vshrl.u32 %v309, 7
        %v311 = vsub.s32 6, %v310
        %v312 = vrot.slane %v253, %v311
        %v316 = vlaneseq
        %v317 = vshrl.u32 %v316, 7
        %v318 = vsub.s32 3, %v317
        %v319 = vrot.slane %v281, %v318
        %v320 = vlaneseq
        %v321 = vshrl.u32 %v320, 7
        %v322 = vsub.s32 7, %v321
        %v323 = vrot.slane %v281, %v322
        %vm326 = vcmask 1040384
        %v327 = vsel %vm326, %v286, %v297
        %v328 = vsel %vm326, %v290, %v301
        %vm329 = vcmask 1041408
        %v330 = vsel %vm329, %v327, %v308
        %v331 = vsel %vm329, %v328, %v312
        %vm332 = vcmask 1042432
        %v333 = vsel %vm332, %v330, %v319
        %v334 = vsel %vm332, %v331, %v323
        %v337 = vcombine.low %v333, %v334
        %339 = vst [vmem:[%s160] sm:$0xff] %v337
        %s340 = sand.u32 %s78, 1
        %s341 = scalar_lea.sflag [#allocation7], %s340
        %s342 = sand.u32 %s78, 1
        %s343 = smul.addr %s342, 8
        %s344 = scalar_lea.vmem [#allocation8], %s343
        // Predicated region
        $region29: #{tpu_custom_call.1} parent=23 // pred_check
          %p345 = pneg %p88
        $region30: #{tpu_custom_call.1} parent=23 // pred_check_branch
          %347 = sbr.rel (%p345) target = $region32
        $region31: #{tpu_custom_call.1} parent=23 // pred_region
          %s348 = smul.u32 2, %s33
          %s350 = ssub.s32 128, 128
          %351 = vsyncadd %s341, %s350
          %s352 = smul.addr %s32, 2
          %s353 = sadd.s32 %s348, %s352
          %s354 = smul.addr %s353, 64
          %s355 = scalar_lea.hbm %s3, %s354
          %s357 = sshll.u32 %s344, 4
          %s358 = int_to_ptr.vmem [resolvable:$true] %s357
          %360 = dma.vmem_to_hbm [thread:$0]  %s358, 128, %s355, %s341
        $region32: #{tpu_custom_call.1} parent=23 // pred_fallthru
          _
      $region24: #{tpu_custom_call.1} parent=5 // pred_fallthru
        _
      %p361 = scmp.le.s32.totalorder 2, %s23
      // Predicated region
      $region33: #{tpu_custom_call.1} parent=5 // pred_check
        %p362 = pneg %p361
      $region34: #{tpu_custom_call.1} parent=5 // pred_check_branch
        %364 = sbr.rel (%p362) target = $region36
      $region35: #{tpu_custom_call.1} parent=5 // pred_region
        %s365 = ssub.s32 %s23, 2
        // Predicated region
        $region37: #{tpu_custom_call.1} parent=35 // pred_check
          %p366 = pneg %p94
        $region38: #{tpu_custom_call.1} parent=35 // pred_check_branch
          %368 = sbr.rel (%p366) target = $region40
        $region39: #{tpu_custom_call.1} parent=35 // pred_region
          %s369 = sand.u32 %s79, 1
          %s370 = scalar_lea.sflag [#allocation7], %s369
          %s371 = sand.u32 %s79, 1
          %s372 = smul.addr %s371, 8
          %s373 = scalar_lea.vmem [#allocation8], %s372
          %374 = dma.done %s370, 128
        $region40: #{tpu_custom_call.1} parent=35 // pred_fallthru
          _
      $region36: #{tpu_custom_call.1} parent=5 // pred_fallthru
        _
    $region6: #{tpu_custom_call.1} parent=1 // loop_footer
      %s27 = sadd.s32 1, %s23
    $region7: #{tpu_custom_call.1} parent=1 // loop_footer_branch
      %22 = sbr.rel target = $region3
    $region8: #{tpu_custom_call.1} parent=1 // loop_exit
      _
    %375 = vsyncpa [#allocation6], 1
    %s376 = scalar_lea.sflag [#allocation6], 1
    %377 = vsyncpa %s376, 1
    %378 = vsyncpa [#allocation7], 1
    %s379 = scalar_lea.sflag [#allocation7], 1
    %380 = vsyncpa %s379, 1

</llo_original>
